<compile_context>
chip_gen: v5e
topology: v5e:2x2
jax: 0.10.0
libtpu: 0.0.40
codegen_flags: <defaults>
</compile_context>

<pallas_src>
import math
import jax
import jax.numpy as jnp
from jax.experimental import pallas as pl
from jax.experimental.pallas import tpu as pltpu

IN_FEATURES = 784
OUT_FEATURES = 10
K_PAD = 896    # 7 * 128 — aligned contraction dim
N_PAD = 128    # lane-dense output dim
MAX_BATCH_TILE = 256  # MXU-height tile for v6e/v7x; fine on v5e too


def linear_kernel(x_ref, w_ref, b_ref, o_ref):
    # Single MXU matmul per batch tile (bf16 in, f32 accumulate) + VPU bias add.
    o_ref[...] = (
        jnp.dot(x_ref[...], w_ref[...], preferred_element_type=jnp.float32)
        + b_ref[...]
    )


def _round_up(x, m):
    return (x + m - 1) // m * m


def mnist_logistic_forward(x, w, b):
    """y = x @ w.T + b.

    x: (B, 784) float32, w: (10, 784) float32, b: (10,) float32 -> (B, 10) float32
    """
    B = x.shape[0]

    # Batch tile: big enough to fill the MXU, clamped for small batches,
    # always a multiple of 8 (sublane constraint).
    bt = min(MAX_BATCH_TILE, _round_up(B, 8))
    Bp = _round_up(B, bt)

    # Zero-pad to lane-dense / aligned shapes; cast inputs to bf16.
    x_p = (
        jnp.zeros((Bp, K_PAD), jnp.bfloat16)
        .at[:B, :IN_FEATURES]
        .set(x.astype(jnp.bfloat16))
    )
    w_t = (
        jnp.zeros((K_PAD, N_PAD), jnp.bfloat16)
        .at[:IN_FEATURES, :OUT_FEATURES]
        .set(w.T.astype(jnp.bfloat16))
    )
    b_p = (
        jnp.zeros((1, N_PAD), jnp.float32)
        .at[0, :OUT_FEATURES]
        .set(b.astype(jnp.float32))
    )

    grid = (Bp // bt,)
    y_p = pl.pallas_call(
        linear_kernel,
        out_shape=jax.ShapeDtypeStruct((Bp, N_PAD), jnp.float32),
        grid_spec=pltpu.PrefetchScalarGridSpec(
            num_scalar_prefetch=0,
            grid=grid,
            in_specs=[
                pl.BlockSpec((bt, K_PAD), lambda i: (i, 0)),      # x: batch-tiled
                pl.BlockSpec((K_PAD, N_PAD), lambda i: (0, 0)),   # weight: resident
                pl.BlockSpec((1, N_PAD), lambda i: (0, 0)),       # bias: resident
            ],
            out_specs=pl.BlockSpec((bt, N_PAD), lambda i: (i, 0)),
        ),
        compiler_params=pltpu.CompilerParams(
            # Batch tiles are independent -> shard across TensorCores on v7x.
            dimension_semantics=("parallel",),
        ),
    )(x_p, w_t, b_p)

    # Strip batch / lane padding.
    return y_p[:B, :OUT_FEATURES]


if __name__ == "__main__":
    key = jax.random.PRNGKey(0)
    kx, kw, kb = jax.random.split(key, 3)

    batch = 64  # matches `bs = 64` in the original script

    # nn.Linear default init: uniform in [-1/sqrt(fan_in), 1/sqrt(fan_in)].
    bound = 1.0 / math.sqrt(IN_FEATURES)
    w = jax.random.uniform(
        kw, (OUT_FEATURES, IN_FEATURES), jnp.float32, -bound, bound
    )
    b = jax.random.uniform(kb, (OUT_FEATURES,), jnp.float32, -bound, bound)
    x = jax.random.normal(kx, (batch, IN_FEATURES), jnp.float32)

    y = mnist_logistic_forward(x, w, b)
    jax.block_until_ready(y)

    # Reference in plain JAX (f32). Loose tolerance because kernel inputs are
    # rounded to bf16 (accumulation is still f32).
    y_ref = x @ w.T + b[None, :]
    assert y.shape == (batch, OUT_FEATURES)
    assert jnp.allclose(y, y_ref, atol=2e-2, rtol=2e-2), (
        float(jnp.max(jnp.abs(y - y_ref)))
    )

    print("KERNEL_OK")
</pallas_src>

<mosaic_0001>
module attributes {stable_mosaic.version = 11 : i64} {
  func.func @linear_kernel(%arg0: i32, %arg1: memref<64x896xbf16, #tpu.memory_space<vmem>>, %arg2: memref<896x128xbf16, #tpu.memory_space<vmem>>, %arg3: memref<1x128xf32, #tpu.memory_space<vmem>>, %arg4: memref<64x128xf32, #tpu.memory_space<vmem>>) attributes {dimension_semantics = [#tpu.dimension_semantics<parallel>], iteration_bounds = array<i64: 1>, scalar_prefetch = 0 : i64, scratch_operands = 0 : i64, tpu.core_type = #tpu.core_type<tc>, window_params = [{transform_indices = @transform_0, window_bounds = array<i64: 64, 896>}, {pipeline_mode = #tpu.pipeline_mode<synchronous>, transform_indices = @transform_1, window_bounds = array<i64: 896, 128>}, {pipeline_mode = #tpu.pipeline_mode<synchronous>, transform_indices = @transform_2, window_bounds = array<i64: 1, 128>}, {transform_indices = @transform_3, window_bounds = array<i64: 64, 128>}]} {
    %c0 = arith.constant 0 : index
    %c0_0 = arith.constant 0 : index
    %0 = vector.load %arg1[%c0, %c0_0] : memref<64x896xbf16, #tpu.memory_space<vmem>>, vector<64x896xbf16>
    %c0_1 = arith.constant 0 : index
    %c0_2 = arith.constant 0 : index
    %1 = vector.load %arg2[%c0_1, %c0_2] : memref<896x128xbf16, #tpu.memory_space<vmem>>, vector<896x128xbf16>
    %cst = arith.constant dense<0.000000e+00> : vector<64x128xf32>
    %2 = tpu.matmul %0, %1, %cst {dimension_numbers = #tpu.dot_dimension_numbers<[1], [0], [0], [1], [0, 0, 1, 1], [], []>} : vector<64x896xbf16>, vector<896x128xbf16>, vector<64x128xf32> -> vector<64x128xf32>
    %c0_3 = arith.constant 0 : index
    %c0_4 = arith.constant 0 : index
    %3 = vector.load %arg3[%c0_3, %c0_4] : memref<1x128xf32, #tpu.memory_space<vmem>>, vector<1x128xf32>
    %4 = vector.broadcast %3 : vector<1x128xf32> to vector<64x128xf32>
    %5 = arith.addf %2, %4 : vector<64x128xf32>
    %c0_5 = arith.constant 0 : index
    %c0_6 = arith.constant 0 : index
    %6 = vector.load %arg4[%c0_5, %c0_6] : memref<64x128xf32, #tpu.memory_space<vmem>>, vector<64x128xf32>
    tpu.vector_store %arg4[%c0_5, %c0_6], %5 {strides = array<i32>} : memref<64x128xf32, #tpu.memory_space<vmem>>, vector<64x128xf32>,
    return
  }
  func.func @transform_0(%arg0: i32) -> (i32, i32) {
    %c0_i32 = arith.constant 0 : i32
    %c0_i32_0 = arith.constant 0 : i32
    return %arg0, %c0_i32 : i32, i32
  }
  func.func @transform_1(%arg0: i32) -> (i32, i32) {
    %c0_i32 = arith.constant 0 : i32
    %c0_i32_0 = arith.constant 0 : i32
    %c0_i32_1 = arith.constant 0 : i32
    return %c0_i32, %c0_i32_0 : i32, i32
  }
  func.func @transform_2(%arg0: i32) -> (i32, i32) {
    %c0_i32 = arith.constant 0 : i32
    %c0_i32_0 = arith.constant 0 : i32
    %c0_i32_1 = arith.constant 0 : i32
    return %c0_i32, %c0_i32_0 : i32, i32
  }
  func.func @transform_3(%arg0: i32) -> (i32, i32) {
    %c0_i32 = arith.constant 0 : i32
    %c0_i32_0 = arith.constant 0 : i32
    return %arg0, %c0_i32 : i32, i32
  }
}

</mosaic_0001>

<llo_original>
// kernel: tpu_custom_call.1
$region0: #{tpu_custom_call.1}
  #allocation0 [shape = 'u32[]', space=smem, size = 0x4, offset = 0x4, fixed_abs, tag = 'smem constant byte address 0x4 - core index']
  #allocation1 [shape = 'u32[72,128]{1,0:T(1,128)}', space=vmem, size = 0x9000, scoped, tag = 'internal scratch']
  %s0 = inlined_call_operand.hbm [shape: bf16[64,896], index: 0, kind: input, shape index: {}]
  %s1 = inlined_call_operand.hbm [shape: bf16[896,128], index: 1, kind: input, shape index: {}]
  %s2 = inlined_call_operand.vmem [shape: f32[1,128], index: 2, kind: input, shape index: {}]
  %s3 = inlined_call_operand.hbm [shape: f32[64,128], index: 3, kind: output, shape index: {}]
  %s4 = sld [smem:[#allocation0]]
  $region30: #{tpu_custom_call.1} parent=0
    _
  %s6 = ssub.s32 1, %s4
  %s7 = scalar_select 0, %s6, %s4
  $region1: #{tpu_custom_call.1} parent=0
    #allocation2 [shape = 'u8[114688]{0}', space=vmem, size = 0x1c000, scoped, tag = 'input window, operand 0, single buffered']
    #allocation3 [shape = 's32[1]{0}', space=sflag, size = 0x4, scoped, tag = 'scoped memory for tpu_custom_call.1']
    #allocation4 [shape = 's32[1]{0}', space=sflag, size = 0x4, scoped, tag = 'scoped memory for tpu_custom_call.1']
    #allocation5 [shape = 'u8[229376]{0}', space=vmem, size = 0x38000, scoped, tag = 'input window, operand 1, single buffered']
    #allocation6 [shape = 's32[1]{0}', space=sflag, size = 0x4, scoped, tag = 'scoped memory for tpu_custom_call.1']
    #allocation7 [shape = 'u8[32768]{0}', space=vmem, size = 0x8000, scoped, tag = 'output window, operand 0, single buffered']
    %8 = vsyncpa [#allocation3], 0
    %9 = vsyncpa [#allocation6], 0
    %10 = vsyncpa [#allocation4], 0
    // Predicated region
    $region2: #{tpu_custom_call.1} parent=1 // pred_check
      _
    $region3: #{tpu_custom_call.1} parent=1 // pred_check_branch
      %12 = sbr.rel (0) target = $region5
    $region4: #{tpu_custom_call.1} parent=1 // pred_region
      %14 = vsyncadd [#allocation3], 0
      %s15 = sshll.u32 %s0, 4
      %s16 = int_to_ptr.hbm [resolvable:$true] %s15
      %s17 = sshll.u32 [#allocation2], 4
      %s18 = int_to_ptr.vmem [resolvable:$true] %s17
      %23 = dma.hbm_to_vmem [thread:$0]  %s16, 3584, %s18, [#allocation3], 448, 448, 28
    $region5: #{tpu_custom_call.1} parent=1 // pred_fallthru
      _
    // Predicated region
    $region6: #{tpu_custom_call.1} parent=1 // pred_check
      _
    $region7: #{tpu_custom_call.1} parent=1 // pred_check_branch
      %25 = sbr.rel (0) target = $region9
    $region8: #{tpu_custom_call.1} parent=1 // pred_region
      %27 = vsyncadd [#allocation6], 0
      %s28 = sshll.u32 %s1, 4
      %s29 = int_to_ptr.hbm [resolvable:$true] %s28
      %s30 = sshll.u32 [#allocation5], 4
      %s31 = int_to_ptr.vmem [resolvable:$true] %s30
      %36 = dma.hbm_to_vmem [thread:$0]  %s29, 7168, %s31, [#allocation6], 64, 64, 4
    $region9: #{tpu_custom_call.1} parent=1 // pred_fallthru
      _
    // Predicated region
    $region10: #{tpu_custom_call.1} parent=1 // pred_check
      _
    $region11: #{tpu_custom_call.1} parent=1 // pred_check_branch
      %38 = sbr.rel (0) target = $region13
    $region12: #{tpu_custom_call.1} parent=1 // pred_region
      _
    $region13: #{tpu_custom_call.1} parent=1 // pred_fallthru
      _
    // Predicated region
    $region14: #{tpu_custom_call.1} parent=1 // pred_check
      _
    $region15: #{tpu_custom_call.1} parent=1 // pred_check_branch
      %40 = sbr.rel (0) target = $region17
    $region16: #{tpu_custom_call.1} parent=1 // pred_region
      %42 = dma.done [#allocation3], 3584
    $region17: #{tpu_custom_call.1} parent=1 // pred_fallthru
      _
    // Predicated region
    $region18: #{tpu_custom_call.1} parent=1 // pred_check
      _
    $region19: #{tpu_custom_call.1} parent=1 // pred_check_branch
      %44 = sbr.rel (0) target = $region21
    $region20: #{tpu_custom_call.1} parent=1 // pred_region
      %46 = dma.done [#allocation6], 7168
    $region21: #{tpu_custom_call.1} parent=1 // pred_fallthru
      _
    %v47 = vld [vmem:[#allocation2] sm:$0xff]
    %v48 = vld [vmem:[#allocation2 + $0x8] sm:$0xff]
    %v49 = vld [vmem:[#allocation2 + $0x10] sm:$0xff]
    %v50 = vld [vmem:[#allocation2 + $0x18] sm:$0xf]
    %v51 = vld [vmem:[#allocation2 + $0x1c] sm:$0xff]
    %v52 = vld [vmem:[#allocation2 + $0x24] sm:$0xff]
    %v53 = vld [vmem:[#allocation2 + $0x2c] sm:$0xff]
    %v54 = vld [vmem:[#allocation2 + $0x34] sm:$0xf]
    %v55 = vld [vmem:[#allocation2 + $0x38] sm:$0xff]
    %v56 = vld [vmem:[#allocation2 + $0x40] sm:$0xff]
    %v57 = vld [vmem:[#allocation2 + $0x48] sm:$0xff]
    %v58 = vld [vmem:[#allocation2 + $0x50] sm:$0xf]
    %v59 = vld [vmem:[#allocation2 + $0x54] sm:$0xff]
    %v60 = vld [vmem:[#allocation2 + $0x5c] sm:$0xff]
    %v61 = vld [vmem:[#allocation2 + $0x64] sm:$0xff]
    %v62 = vld [vmem:[#allocation2 + $0x6c] sm:$0xf]
    %v63 = vld [vmem:[#allocation2 + $0x70] sm:$0xff]
    %v64 = vld [vmem:[#allocation2 + $0x78] sm:$0xff]
    %v65 = vld [vmem:[#allocation2 + $0x80] sm:$0xff]
    %v66 = vld [vmem:[#allocation2 + $0x88] sm:$0xf]
    %v67 = vld [vmem:[#allocation2 + $0x8c] sm:$0xff]
    %v68 = vld [vmem:[#allocation2 + $0x94] sm:$0xff]
    %v69 = vld [vmem:[#allocation2 + $0x9c] sm:$0xff]
    %v70 = vld [vmem:[#allocation2 + $0xa4] sm:$0xf]
    %v71 = vld [vmem:[#allocation2 + $0xa8] sm:$0xff]
    %v72 = vld [vmem:[#allocation2 + $0xb0] sm:$0xff]
    %v73 = vld [vmem:[#allocation2 + $0xb8] sm:$0xff]
    %v74 = vld [vmem:[#allocation2 + $0xc0] sm:$0xf]
    %v75 = vld [vmem:[#allocation2 + $0xc4] sm:$0xff]
    %v76 = vld [vmem:[#allocation2 + $0xcc] sm:$0xff]
    %v77 = vld [vmem:[#allocation2 + $0xd4] sm:$0xff]
    %v78 = vld [vmem:[#allocation2 + $0xdc] sm:$0xf]
    %v79 = vld [vmem:[#allocation5] sm:$0xf]
    %v80 = vld [vmem:[#allocation5 + $0x4] sm:$0xf]
    %v81 = vld [vmem:[#allocation5 + $0x8] sm:$0xf]
    %v82 = vld [vmem:[#allocation5 + $0xc] sm:$0xf]
    %v83 = vld [vmem:[#allocation5 + $0x10] sm:$0xf]
    %v84 = vld [vmem:[#allocation5 + $0x14] sm:$0xf]
    %v85 = vld [vmem:[#allocation5 + $0x18] sm:$0xf]
    %v86 = vld [vmem:[#allocation5 + $0x1c] sm:$0xf]
    %v87 = vld [vmem:[#allocation5 + $0x20] sm:$0xf]
    %v88 = vld [vmem:[#allocation5 + $0x24] sm:$0xf]
    %v89 = vld [vmem:[#allocation5 + $0x28] sm:$0xf]
    %v90 = vld [vmem:[#allocation5 + $0x2c] sm:$0xf]
    %v91 = vld [vmem:[#allocation5 + $0x30] sm:$0xf]
    %v92 = vld [vmem:[#allocation5 + $0x34] sm:$0xf]
    %v93 = vld [vmem:[#allocation5 + $0x38] sm:$0xf]
    %v94 = vld [vmem:[#allocation5 + $0x3c] sm:$0xf]
    %v95 = vld [vmem:[#allocation5 + $0x40] sm:$0xf]
    %v96 = vld [vmem:[#allocation5 + $0x44] sm:$0xf]
    %v97 = vld [vmem:[#allocation5 + $0x48] sm:$0xf]
    %v98 = vld [vmem:[#allocation5 + $0x4c] sm:$0xf]
    %v99 = vld [vmem:[#allocation5 + $0x50] sm:$0xf]
    %v100 = vld [vmem:[#allocation5 + $0x54] sm:$0xf]
    %v101 = vld [vmem:[#allocation5 + $0x58] sm:$0xf]
    %v102 = vld [vmem:[#allocation5 + $0x5c] sm:$0xf]
    %v103 = vld [vmem:[#allocation5 + $0x60] sm:$0xf]
    %v104 = vld [vmem:[#allocation5 + $0x64] sm:$0xf]
    %v105 = vld [vmem:[#allocation5 + $0x68] sm:$0xf]
    %v106 = vld [vmem:[#allocation5 + $0x6c] sm:$0xf]
    %v107 = vld [vmem:[#allocation5 + $0x70] sm:$0xf]
    %v108 = vld [vmem:[#allocation5 + $0x74] sm:$0xf]
    %v109 = vld [vmem:[#allocation5 + $0x78] sm:$0xf]
    %v110 = vld [vmem:[#allocation5 + $0x7c] sm:$0xf]
    %v111 = vld [vmem:[#allocation5 + $0x80] sm:$0xf]
    %v112 = vld [vmem:[#allocation5 + $0x84] sm:$0xf]
    %v113 = vld [vmem:[#allocation5 + $0x88] sm:$0xf]
    %v114 = vld [vmem:[#allocation5 + $0x8c] sm:$0xf]
    %v115 = vld [vmem:[#allocation5 + $0x90] sm:$0xf]
    %v116 = vld [vmem:[#allocation5 + $0x94] sm:$0xf]
    %v117 = vld [vmem:[#allocation5 + $0x98] sm:$0xf]
    %v118 = vld [vmem:[#allocation5 + $0x9c] sm:$0xf]
    %v119 = vld [vmem:[#allocation5 + $0xa0] sm:$0xf]
    %v120 = vld [vmem:[#allocation5 + $0xa4] sm:$0xf]
    %v121 = vld [vmem:[#allocation5 + $0xa8] sm:$0xf]
    %v122 = vld [vmem:[#allocation5 + $0xac] sm:$0xf]
    %v123 = vld [vmem:[#allocation5 + $0xb0] sm:$0xf]
    %v124 = vld [vmem:[#allocation5 + $0xb4] sm:$0xf]
    %v125 = vld [vmem:[#allocation5 + $0xb8] sm:$0xf]
    %v126 = vld [vmem:[#allocation5 + $0xbc] sm:$0xf]
    %v127 = vld [vmem:[#allocation5 + $0xc0] sm:$0xf]
    %v128 = vld [vmem:[#allocation5 + $0xc4] sm:$0xf]
    %v129 = vld [vmem:[#allocation5 + $0xc8] sm:$0xf]
    %v130 = vld [vmem:[#allocation5 + $0xcc] sm:$0xf]
    %v131 = vld [vmem:[#allocation5 + $0xd0] sm:$0xf]
    %v132 = vld [vmem:[#allocation5 + $0xd4] sm:$0xf]
    %v133 = vld [vmem:[#allocation5 + $0xd8] sm:$0xf]
    %v134 = vld [vmem:[#allocation5 + $0xdc] sm:$0xf]
    %v135 = vld [vmem:[#allocation5 + $0xe0] sm:$0xf]
    %v136 = vld [vmem:[#allocation5 + $0xe4] sm:$0xf]
    %v137 = vld [vmem:[#allocation5 + $0xe8] sm:$0xf]
    %v138 = vld [vmem:[#allocation5 + $0xec] sm:$0xf]
    %v139 = vld [vmem:[#allocation5 + $0xf0] sm:$0xf]
    %v140 = vld [vmem:[#allocation5 + $0xf4] sm:$0xf]
    %v141 = vld [vmem:[#allocation5 + $0xf8] sm:$0xf]
    %v142 = vld [vmem:[#allocation5 + $0xfc] sm:$0xf]
    %v143 = vld [vmem:[#allocation5 + $0x100] sm:$0xf]
    %v144 = vld [vmem:[#allocation5 + $0x104] sm:$0xf]
    %v145 = vld [vmem:[#allocation5 + $0x108] sm:$0xf]
    %v146 = vld [vmem:[#allocation5 + $0x10c] sm:$0xf]
    %v147 = vld [vmem:[#allocation5 + $0x110] sm:$0xf]
    %v148 = vld [vmem:[#allocation5 + $0x114] sm:$0xf]
    %v149 = vld [vmem:[#allocation5 + $0x118] sm:$0xf]
    %v150 = vld [vmem:[#allocation5 + $0x11c] sm:$0xf]
    %v151 = vld [vmem:[#allocation5 + $0x120] sm:$0xf]
    %v152 = vld [vmem:[#allocation5 + $0x124] sm:$0xf]
    %v153 = vld [vmem:[#allocation5 + $0x128] sm:$0xf]
    %v154 = vld [vmem:[#allocation5 + $0x12c] sm:$0xf]
    %v155 = vld [vmem:[#allocation5 + $0x130] sm:$0xf]
    %v156 = vld [vmem:[#allocation5 + $0x134] sm:$0xf]
    %v157 = vld [vmem:[#allocation5 + $0x138] sm:$0xf]
    %v158 = vld [vmem:[#allocation5 + $0x13c] sm:$0xf]
    %v159 = vld [vmem:[#allocation5 + $0x140] sm:$0xf]
    %v160 = vld [vmem:[#allocation5 + $0x144] sm:$0xf]
    %v161 = vld [vmem:[#allocation5 + $0x148] sm:$0xf]
    %v162 = vld [vmem:[#allocation5 + $0x14c] sm:$0xf]
    %v163 = vld [vmem:[#allocation5 + $0x150] sm:$0xf]
    %v164 = vld [vmem:[#allocation5 + $0x154] sm:$0xf]
    %v165 = vld [vmem:[#allocation5 + $0x158] sm:$0xf]
    %v166 = vld [vmem:[#allocation5 + $0x15c] sm:$0xf]
    %v167 = vld [vmem:[#allocation5 + $0x160] sm:$0xf]
    %v168 = vld [vmem:[#allocation5 + $0x164] sm:$0xf]
    %v169 = vld [vmem:[#allocation5 + $0x168] sm:$0xf]
    %v170 = vld [vmem:[#allocation5 + $0x16c] sm:$0xf]
    %v171 = vld [vmem:[#allocation5 + $0x170] sm:$0xf]
    %v172 = vld [vmem:[#allocation5 + $0x174] sm:$0xf]
    %v173 = vld [vmem:[#allocation5 + $0x178] sm:$0xf]
    %v174 = vld [vmem:[#allocation5 + $0x17c] sm:$0xf]
    %v175 = vld [vmem:[#allocation5 + $0x180] sm:$0xf]
    %v176 = vld [vmem:[#allocation5 + $0x184] sm:$0xf]
    %v177 = vld [vmem:[#allocation5 + $0x188] sm:$0xf]
    %v178 = vld [vmem:[#allocation5 + $0x18c] sm:$0xf]
    %v179 = vld [vmem:[#allocation5 + $0x190] sm:$0xf]
    %v180 = vld [vmem:[#allocation5 + $0x194] sm:$0xf]
    %v181 = vld [vmem:[#allocation5 + $0x198] sm:$0xf]
    %v182 = vld [vmem:[#allocation5 + $0x19c] sm:$0xf]
    %v183 = vld [vmem:[#allocation5 + $0x1a0] sm:$0xf]
    %v184 = vld [vmem:[#allocation5 + $0x1a4] sm:$0xf]
    %v185 = vld [vmem:[#allocation5 + $0x1a8] sm:$0xf]
    %v186 = vld [vmem:[#allocation5 + $0x1ac] sm:$0xf]
    %v187 = vld [vmem:[#allocation5 + $0x1b0] sm:$0xf]
    %v188 = vld [vmem:[#allocation5 + $0x1b4] sm:$0xf]
    %v189 = vld [vmem:[#allocation5 + $0x1b8] sm:$0xf]
    %v190 = vld [vmem:[#allocation5 + $0x1bc] sm:$0xf]
    %v191 = vld [vmem:[%s2] sm:$0x1]
    %v193 = vperm.slane %v191, 0
    %v227 = vunpack.c.l.b16 %v47
    %v228 = vunpack.c.h.b16 %v47
    %v229 = vunpack.c.l.b16 %v48
    %v230 = vunpack.c.h.b16 %v48
    %v231 = vunpack.c.l.b16 %v49
    %v232 = vunpack.c.h.b16 %v49
    %v233 = vunpack.c.l.b16 %v50
    %v234 = vunpack.c.l.b16 %v51
    %v235 = vunpack.c.h.b16 %v51
    %v236 = vunpack.c.l.b16 %v52
    %v237 = vunpack.c.h.b16 %v52
    %v238 = vunpack.c.l.b16 %v53
    %v239 = vunpack.c.h.b16 %v53
    %v240 = vunpack.c.l.b16 %v54
    %v241 = vunpack.c.l.b16 %v55
    %v242 = vunpack.c.h.b16 %v55
    %v243 = vunpack.c.l.b16 %v56
    %v244 = vunpack.c.h.b16 %v56
    %v245 = vunpack.c.l.b16 %v57
    %v246 = vunpack.c.h.b16 %v57
    %v247 = vunpack.c.l.b16 %v58
    %v248 = vunpack.c.l.b16 %v59
    %v249 = vunpack.c.h.b16 %v59
    %v250 = vunpack.c.l.b16 %v60
    %v251 = vunpack.c.h.b16 %v60
    %v252 = vunpack.c.l.b16 %v61
    %v253 = vunpack.c.h.b16 %v61
    %v254 = vunpack.c.l.b16 %v62
    %v255 = vunpack.c.l.b16 %v63
    %v256 = vunpack.c.h.b16 %v63
    %v257 = vunpack.c.l.b16 %v64
    %v258 = vunpack.c.h.b16 %v64
    %v259 = vunpack.c.l.b16 %v65
    %v260 = vunpack.c.h.b16 %v65
    %v261 = vunpack.c.l.b16 %v66
    %v262 = vunpack.c.l.b16 %v67
    %v263 = vunpack.c.h.b16 %v67
    %v264 = vunpack.c.l.b16 %v68
    %v265 = vunpack.c.h.b16 %v68
    %v266 = vunpack.c.l.b16 %v69
    %v267 = vunpack.c.h.b16 %v69
    %v268 = vunpack.c.l.b16 %v70
    %v269 = vunpack.c.l.b16 %v71
    %v270 = vunpack.c.h.b16 %v71
    %v271 = vunpack.c.l.b16 %v72
    %v272 = vunpack.c.h.b16 %v72
    %v273 = vunpack.c.l.b16 %v73
    %v274 = vunpack.c.h.b16 %v73
    %v275 = vunpack.c.l.b16 %v74
    %v276 = vunpack.c.l.b16 %v75
    %v277 = vunpack.c.h.b16 %v75
    %v278 = vunpack.c.l.b16 %v76
    %v279 = vunpack.c.h.b16 %v76
    %v280 = vunpack.c.l.b16 %v77
    %v281 = vunpack.c.h.b16 %v77
    %v282 = vunpack.c.l.b16 %v78
    %v283 = vpack.c.b16 %v234, %v227
    %v284 = vpack.c.b16 %v235, %v228
    %v285 = vpack.c.b16 %v236, %v229
    %v286 = vpack.c.b16 %v237, %v230
    %v287 = vpack.c.b16 %v238, %v231
    %v288 = vpack.c.b16 %v239, %v232
    %v289 = vpack.c.b16 %v240, %v233
    %v290 = vpack.c.b16 %v248, %v241
    %v291 = vpack.c.b16 %v249, %v242
    %v292 = vpack.c.b16 %v250, %v243
    %v293 = vpack.c.b16 %v251, %v244
    %v294 = vpack.c.b16 %v252, %v245
    %v295 = vpack.c.b16 %v253, %v246
    %v296 = vpack.c.b16 %v254, %v247
    %v297 = vpack.c.b16 %v262, %v255
    %v298 = vpack.c.b16 %v263, %v256
    %v299 = vpack.c.b16 %v264, %v257
    %v300 = vpack.c.b16 %v265, %v258
    %v301 = vpack.c.b16 %v266, %v259
    %v302 = vpack.c.b16 %v267, %v260
    %v303 = vpack.c.b16 %v268, %v261
    %v304 = vpack.c.b16 %v276, %v269
    %v305 = vpack.c.b16 %v277, %v270
    %v306 = vpack.c.b16 %v278, %v271
    %v307 = vpack.c.b16 %v279, %v272
    %v308 = vpack.c.b16 %v280, %v273
    %v309 = vpack.c.b16 %v281, %v274
    %v310 = vpack.c.b16 %v282, %v275
    %v451 = vunpack.c.l.b16 %v79
    %v452 = vunpack.c.l.b16 %v80
    %v453 = vunpack.c.l.b16 %v81
    %v454 = vunpack.c.l.b16 %v82
    %v455 = vunpack.c.l.b16 %v83
    %v456 = vunpack.c.l.b16 %v84
    %v457 = vunpack.c.l.b16 %v85
    %v458 = vunpack.c.l.b16 %v86
    %v459 = vunpack.c.l.b16 %v87
    %v460 = vunpack.c.l.b16 %v88
    %v461 = vunpack.c.l.b16 %v89
    %v462 = vunpack.c.l.b16 %v90
    %v463 = vunpack.c.l.b16 %v91
    %v464 = vunpack.c.l.b16 %v92
    %v465 = vunpack.c.l.b16 %v93
    %v466 = vunpack.c.l.b16 %v94
    %v467 = vunpack.c.l.b16 %v95
    %v468 = vunpack.c.l.b16 %v96
    %v469 = vunpack.c.l.b16 %v97
    %v470 = vunpack.c.l.b16 %v98
    %v471 = vunpack.c.l.b16 %v99
    %v472 = vunpack.c.l.b16 %v100
    %v473 = vunpack.c.l.b16 %v101
    %v474 = vunpack.c.l.b16 %v102
    %v475 = vunpack.c.l.b16 %v103
    %v476 = vunpack.c.l.b16 %v104
    %v477 = vunpack.c.l.b16 %v105
    %v478 = vunpack.c.l.b16 %v106
    %v479 = vunpack.c.l.b16 %v107
    %v480 = vunpack.c.l.b16 %v108
    %v481 = vunpack.c.l.b16 %v109
    %v482 = vunpack.c.l.b16 %v110
    %v483 = vunpack.c.l.b16 %v111
    %v484 = vunpack.c.l.b16 %v112
    %v485 = vunpack.c.l.b16 %v113
    %v486 = vunpack.c.l.b16 %v114
    %v487 = vunpack.c.l.b16 %v115
    %v488 = vunpack.c.l.b16 %v116
    %v489 = vunpack.c.l.b16 %v117
    %v490 = vunpack.c.l.b16 %v118
    %v491 = vunpack.c.l.b16 %v119
    %v492 = vunpack.c.l.b16 %v120
    %v493 = vunpack.c.l.b16 %v121
    %v494 = vunpack.c.l.b16 %v122
    %v495 = vunpack.c.l.b16 %v123
    %v496 = vunpack.c.l.b16 %v124
    %v497 = vunpack.c.l.b16 %v125
    %v498 = vunpack.c.l.b16 %v126
    %v499 = vunpack.c.l.b16 %v127
    %v500 = vunpack.c.l.b16 %v128
    %v501 = vunpack.c.l.b16 %v129
    %v502 = vunpack.c.l.b16 %v130
    %v503 = vunpack.c.l.b16 %v131
    %v504 = vunpack.c.l.b16 %v132
    %v505 = vunpack.c.l.b16 %v133
    %v506 = vunpack.c.l.b16 %v134
    %v507 = vunpack.c.l.b16 %v135
    %v508 = vunpack.c.l.b16 %v136
    %v509 = vunpack.c.l.b16 %v137
    %v510 = vunpack.c.l.b16 %v138
    %v511 = vunpack.c.l.b16 %v139
    %v512 = vunpack.c.l.b16 %v140
    %v513 = vunpack.c.l.b16 %v141
    %v514 = vunpack.c.l.b16 %v142
    %v515 = vunpack.c.l.b16 %v143
    %v516 = vunpack.c.l.b16 %v144
    %v517 = vunpack.c.l.b16 %v145
    %v518 = vunpack.c.l.b16 %v146
    %v519 = vunpack.c.l.b16 %v147
    %v520 = vunpack.c.l.b16 %v148
    %v521 = vunpack.c.l.b16 %v149
    %v522 = vunpack.c.l.b16 %v150
    %v523 = vunpack.c.l.b16 %v151
    %v524 = vunpack.c.l.b16 %v152
    %v525 = vunpack.c.l.b16 %v153
    %v526 = vunpack.c.l.b16 %v154
    %v527 = vunpack.c.l.b16 %v155
    %v528 = vunpack.c.l.b16 %v156
    %v529 = vunpack.c.l.b16 %v157
    %v530 = vunpack.c.l.b16 %v158
    %v531 = vunpack.c.l.b16 %v159
    %v532 = vunpack.c.l.b16 %v160
    %v533 = vunpack.c.l.b16 %v161
    %v534 = vunpack.c.l.b16 %v162
    %v535 = vunpack.c.l.b16 %v163
    %v536 = vunpack.c.l.b16 %v164
    %v537 = vunpack.c.l.b16 %v165
    %v538 = vunpack.c.l.b16 %v166
    %v539 = vunpack.c.l.b16 %v167
    %v540 = vunpack.c.l.b16 %v168
    %v541 = vunpack.c.l.b16 %v169
    %v542 = vunpack.c.l.b16 %v170
    %v543 = vunpack.c.l.b16 %v171
    %v544 = vunpack.c.l.b16 %v172
    %v545 = vunpack.c.l.b16 %v173
    %v546 = vunpack.c.l.b16 %v174
    %v547 = vunpack.c.l.b16 %v175
    %v548 = vunpack.c.l.b16 %v176
    %v549 = vunpack.c.l.b16 %v177
    %v550 = vunpack.c.l.b16 %v178
    %v551 = vunpack.c.l.b16 %v179
    %v552 = vunpack.c.l.b16 %v180
    %v553 = vunpack.c.l.b16 %v181
    %v554 = vunpack.c.l.b16 %v182
    %v555 = vunpack.c.l.b16 %v183
    %v556 = vunpack.c.l.b16 %v184
    %v557 = vunpack.c.l.b16 %v185
    %v558 = vunpack.c.l.b16 %v186
    %v559 = vunpack.c.l.b16 %v187
    %v560 = vunpack.c.l.b16 %v188
    %v561 = vunpack.c.l.b16 %v189
    %v562 = vunpack.c.l.b16 %v190
    %v563 = vpack.c.b16 %v452, %v451
    %v564 = vpack.c.b16 %v454, %v453
    %v565 = vpack.c.b16 %v456, %v455
    %v566 = vpack.c.b16 %v458, %v457
    %v567 = vpack.c.b16 %v460, %v459
    %v568 = vpack.c.b16 %v462, %v461
    %v569 = vpack.c.b16 %v464, %v463
    %v570 = vpack.c.b16 %v466, %v465
    %v571 = vpack.c.b16 %v468, %v467
    %v572 = vpack.c.b16 %v470, %v469
    %v573 = vpack.c.b16 %v472, %v471
    %v574 = vpack.c.b16 %v474, %v473
    %v575 = vpack.c.b16 %v476, %v475
    %v576 = vpack.c.b16 %v478, %v477
    %v577 = vpack.c.b16 %v480, %v479
    %v578 = vpack.c.b16 %v482, %v481
    %v579 = vpack.c.b16 %v484, %v483
    %v580 = vpack.c.b16 %v486, %v485
    %v581 = vpack.c.b16 %v488, %v487
    %v582 = vpack.c.b16 %v490, %v489
    %v583 = vpack.c.b16 %v492, %v491
    %v584 = vpack.c.b16 %v494, %v493
    %v585 = vpack.c.b16 %v496, %v495
    %v586 = vpack.c.b16 %v498, %v497
    %v587 = vpack.c.b16 %v500, %v499
    %v588 = vpack.c.b16 %v502, %v501
    %v589 = vpack.c.b16 %v504, %v503
    %v590 = vpack.c.b16 %v506, %v505
    %v591 = vpack.c.b16 %v508, %v507
    %v592 = vpack.c.b16 %v510, %v509
    %v593 = vpack.c.b16 %v512, %v511
    %v594 = vpack.c.b16 %v514, %v513
    %v595 = vpack.c.b16 %v516, %v515
    %v596 = vpack.c.b16 %v518, %v517
    %v597 = vpack.c.b16 %v520, %v519
    %v598 = vpack.c.b16 %v522, %v521
    %v599 = vpack.c.b16 %v524, %v523
    %v600 = vpack.c.b16 %v526, %v525
    %v601 = vpack.c.b16 %v528, %v527
    %v602 = vpack.c.b16 %v530, %v529
    %v603 = vpack.c.b16 %v532, %v531
    %v604 = vpack.c.b16 %v534, %v533
    %v605 = vpack.c.b16 %v536, %v535
    %v606 = vpack.c.b16 %v538, %v537
    %v607 = vpack.c.b16 %v540, %v539
    %v608 = vpack.c.b16 %v542, %v541
    %v609 = vpack.c.b16 %v544, %v543
    %v610 = vpack.c.b16 %v546, %v545
    %v611 = vpack.c.b16 %v548, %v547
    %v612 = vpack.c.b16 %v550, %v549
    %v613 = vpack.c.b16 %v552, %v551
    %v614 = vpack.c.b16 %v554, %v553
    %v615 = vpack.c.b16 %v556, %v555
    %v616 = vpack.c.b16 %v558, %v557
    %v617 = vpack.c.b16 %v560, %v559
    %v618 = vpack.c.b16 %v562, %v561
    %675 = vmatpush.bf16.msra.mxu0 %v570
    %676 = vmatpush.bf16.msra.mxu0 %v569
    %677 = vmatpush.bf16.msra.mxu0 %v568
    %678 = vmatpush.bf16.msra.mxu0 %v567
    %679 = vmatpush.bf16.msra.mxu0 %v566
    %680 = vmatpush.bf16.msra.mxu0 %v565
    %681 = vmatpush.bf16.msra.mxu0 %v564
    %682 = vmatpush.bf16.msra.mxu0 %v563
    %683 = vmatmul.bf16.gmra.mxu0 %v283
    %v684 = vpop.f32.mrf.mxu0
    %v685 = vadd.f32 %v193, %v684
    %v686 = vpop.f32.mrf.mxu0
    %v687 = vadd.f32 %v193, %v686
    %688 = vmatmul.bf16.gmra.mxu0 %v290
    %v689 = vpop.f32.mrf.mxu0
    %v690 = vadd.f32 %v193, %v689
    %v691 = vpop.f32.mrf.mxu0
    %v692 = vadd.f32 %v193, %v691
    %693 = vmatmul.bf16.gmra.mxu0 %v297
    %v694 = vpop.f32.mrf.mxu0
    %v695 = vadd.f32 %v193, %v694
    %v696 = vpop.f32.mrf.mxu0
    %v697 = vadd.f32 %v193, %v696
    %698 = vmatmul.bf16.gmra.mxu0 %v304
    %v699 = vpop.f32.mrf.mxu0
    %v700 = vadd.f32 %v193, %v699
    %v701 = vpop.f32.mrf.mxu0
    %v702 = vadd.f32 %v193, %v701
    %703 = vdwg.mxu0
    %704 = vmatpush.bf16.msra.mxu0 %v578
    %705 = vmatpush.bf16.msra.mxu0 %v577
    %706 = vmatpush.bf16.msra.mxu0 %v576
    %707 = vmatpush.bf16.msra.mxu0 %v575
    %708 = vmatpush.bf16.msra.mxu0 %v574
    %709 = vmatpush.bf16.msra.mxu0 %v573
    %710 = vmatpush.bf16.msra.mxu0 %v572
    %711 = vmatpush.bf16.msra.mxu0 %v571
    %712 = vmatmul.bf16.gmra.mxu0 %v284
    %v713 = vpop.f32.mrf.mxu0
    %v714 = vadd.f32 %v685, %v713
    %v715 = vpop.f32.mrf.mxu0
    %v716 = vadd.f32 %v687, %v715
    %717 = vmatmul.bf16.gmra.mxu0 %v291
    %v718 = vpop.f32.mrf.mxu0
    %v719 = vadd.f32 %v690, %v718
    %v720 = vpop.f32.mrf.mxu0
    %v721 = vadd.f32 %v692, %v720
    %722 = vmatmul.bf16.gmra.mxu0 %v298
    %v723 = vpop.f32.mrf.mxu0
    %v724 = vadd.f32 %v695, %v723
    %v725 = vpop.f32.mrf.mxu0
    %v726 = vadd.f32 %v697, %v725
    %727 = vmatmul.bf16.gmra.mxu0 %v305
    %v728 = vpop.f32.mrf.mxu0
    %v729 = vadd.f32 %v700, %v728
    %v730 = vpop.f32.mrf.mxu0
    %v731 = vadd.f32 %v702, %v730
    %732 = vdwg.mxu0
    %733 = vmatpush.bf16.msra.mxu0 %v586
    %734 = vmatpush.bf16.msra.mxu0 %v585
    %735 = vmatpush.bf16.msra.mxu0 %v584
    %736 = vmatpush.bf16.msra.mxu0 %v583
    %737 = vmatpush.bf16.msra.mxu0 %v582
    %738 = vmatpush.bf16.msra.mxu0 %v581
    %739 = vmatpush.bf16.msra.mxu0 %v580
    %740 = vmatpush.bf16.msra.mxu0 %v579
    %741 = vmatmul.bf16.gmra.mxu0 %v285
    %v742 = vpop.f32.mrf.mxu0
    %v743 = vadd.f32 %v714, %v742
    %v744 = vpop.f32.mrf.mxu0
    %v745 = vadd.f32 %v716, %v744
    %746 = vmatmul.bf16.gmra.mxu0 %v292
    %v747 = vpop.f32.mrf.mxu0
    %v748 = vadd.f32 %v719, %v747
    %v749 = vpop.f32.mrf.mxu0
    %v750 = vadd.f32 %v721, %v749
    %751 = vmatmul.bf16.gmra.mxu0 %v299
    %v752 = vpop.f32.mrf.mxu0
    %v753 = vadd.f32 %v724, %v752
    %v754 = vpop.f32.mrf.mxu0
    %v755 = vadd.f32 %v726, %v754
    %756 = vmatmul.bf16.gmra.mxu0 %v306
    %v757 = vpop.f32.mrf.mxu0
    %v758 = vadd.f32 %v729, %v757
    %v759 = vpop.f32.mrf.mxu0
    %v760 = vadd.f32 %v731, %v759
    %761 = vdwg.mxu0
    %762 = vmatpush.bf16.msra.mxu0 %v594
    %763 = vmatpush.bf16.msra.mxu0 %v593
    %764 = vmatpush.bf16.msra.mxu0 %v592
    %765 = vmatpush.bf16.msra.mxu0 %v591
    %766 = vmatpush.bf16.msra.mxu0 %v590
    %767 = vmatpush.bf16.msra.mxu0 %v589
    %768 = vmatpush.bf16.msra.mxu0 %v588
    %769 = vmatpush.bf16.msra.mxu0 %v587
    %770 = vmatmul.bf16.gmra.mxu0 %v286
    %v771 = vpop.f32.mrf.mxu0
    %v772 = vadd.f32 %v743, %v771
    %v773 = vpop.f32.mrf.mxu0
    %v774 = vadd.f32 %v745, %v773
    %775 = vmatmul.bf16.gmra.mxu0 %v293
    %v776 = vpop.f32.mrf.mxu0
    %v777 = vadd.f32 %v748, %v776
    %v778 = vpop.f32.mrf.mxu0
    %v779 = vadd.f32 %v750, %v778
    %780 = vmatmul.bf16.gmra.mxu0 %v300
    %v781 = vpop.f32.mrf.mxu0
    %v782 = vadd.f32 %v753, %v781
    %v783 = vpop.f32.mrf.mxu0
    %v784 = vadd.f32 %v755, %v783
    %785 = vmatmul.bf16.gmra.mxu0 %v307
    %v786 = vpop.f32.mrf.mxu0
    %v787 = vadd.f32 %v758, %v786
    %v788 = vpop.f32.mrf.mxu0
    %v789 = vadd.f32 %v760, %v788
    %790 = vdwg.mxu0
    %791 = vmatpush.bf16.msra.mxu0 %v602
    %792 = vmatpush.bf16.msra.mxu0 %v601
    %793 = vmatpush.bf16.msra.mxu0 %v600
    %794 = vmatpush.bf16.msra.mxu0 %v599
    %795 = vmatpush.bf16.msra.mxu0 %v598
    %796 = vmatpush.bf16.msra.mxu0 %v597
    %797 = vmatpush.bf16.msra.mxu0 %v596
    %798 = vmatpush.bf16.msra.mxu0 %v595
    %799 = vmatmul.bf16.gmra.mxu0 %v287
    %v800 = vpop.f32.mrf.mxu0
    %v801 = vadd.f32 %v772, %v800
    %v802 = vpop.f32.mrf.mxu0
    %v803 = vadd.f32 %v774, %v802
    %804 = vmatmul.bf16.gmra.mxu0 %v294
    %v805 = vpop.f32.mrf.mxu0
    %v806 = vadd.f32 %v777, %v805
    %v807 = vpop.f32.mrf.mxu0
    %v808 = vadd.f32 %v779, %v807
    %809 = vmatmul.bf16.gmra.mxu0 %v301
    %v810 = vpop.f32.mrf.mxu0
    %v811 = vadd.f32 %v782, %v810
    %v812 = vpop.f32.mrf.mxu0
    %v813 = vadd.f32 %v784, %v812
    %814 = vmatmul.bf16.gmra.mxu0 %v308
    %v815 = vpop.f32.mrf.mxu0
    %v816 = vadd.f32 %v787, %v815
    %v817 = vpop.f32.mrf.mxu0
    %v818 = vadd.f32 %v789, %v817
    %819 = vdwg.mxu0
    %820 = vmatpush.bf16.msra.mxu0 %v610
    %821 = vmatpush.bf16.msra.mxu0 %v609
    %822 = vmatpush.bf16.msra.mxu0 %v608
    %823 = vmatpush.bf16.msra.mxu0 %v607
    %824 = vmatpush.bf16.msra.mxu0 %v606
    %825 = vmatpush.bf16.msra.mxu0 %v605
    %826 = vmatpush.bf16.msra.mxu0 %v604
    %827 = vmatpush.bf16.msra.mxu0 %v603
    %828 = vmatmul.bf16.gmra.mxu0 %v288
    %v829 = vpop.f32.mrf.mxu0
    %v830 = vadd.f32 %v801, %v829
    %v831 = vpop.f32.mrf.mxu0
    %v832 = vadd.f32 %v803, %v831
    %833 = vmatmul.bf16.gmra.mxu0 %v295
    %v834 = vpop.f32.mrf.mxu0
    %v835 = vadd.f32 %v806, %v834
    %v836 = vpop.f32.mrf.mxu0
    %v837 = vadd.f32 %v808, %v836
    %838 = vmatmul.bf16.gmra.mxu0 %v302
    %v839 = vpop.f32.mrf.mxu0
    %v840 = vadd.f32 %v811, %v839
    %v841 = vpop.f32.mrf.mxu0
    %v842 = vadd.f32 %v813, %v841
    %843 = vmatmul.bf16.gmra.mxu0 %v309
    %v844 = vpop.f32.mrf.mxu0
    %v845 = vadd.f32 %v816, %v844
    %v846 = vpop.f32.mrf.mxu0
    %v847 = vadd.f32 %v818, %v846
    %848 = vdwg.mxu0
    %849 = vmatpush.bf16.msra.mxu0 %v618
    %850 = vmatpush.bf16.msra.mxu0 %v617
    %851 = vmatpush.bf16.msra.mxu0 %v616
    %852 = vmatpush.bf16.msra.mxu0 %v615
    %853 = vmatpush.bf16.msra.mxu0 %v614
    %854 = vmatpush.bf16.msra.mxu0 %v613
    %855 = vmatpush.bf16.msra.mxu0 %v612
    %856 = vmatpush.bf16.msra.mxu0 %v611
    %857 = vmatmul.bf16.gmra.mxu0 %v289
    %v858 = vpop.f32.mrf.mxu0
    %v859 = vadd.f32 %v830, %v858
    %v860 = vpop.f32.mrf.mxu0
    %v861 = vadd.f32 %v832, %v860
    %862 = vmatmul.bf16.gmra.mxu0 %v296
    %v863 = vpop.f32.mrf.mxu0
    %v864 = vadd.f32 %v835, %v863
    %v865 = vpop.f32.mrf.mxu0
    %v866 = vadd.f32 %v837, %v865
    %867 = vmatmul.bf16.gmra.mxu0 %v303
    %v868 = vpop.f32.mrf.mxu0
    %v869 = vadd.f32 %v840, %v868
    %v870 = vpop.f32.mrf.mxu0
    %v871 = vadd.f32 %v842, %v870
    %872 = vmatmul.bf16.gmra.mxu0 %v310
    %v873 = vpop.f32.mrf.mxu0
    %v874 = vadd.f32 %v845, %v873
    %v875 = vpop.f32.mrf.mxu0
    %v876 = vadd.f32 %v847, %v875
    %877 = vdwg.mxu0
    %878 = vst [vmem:[#allocation7] sm:$0xff] %v859
    %879 = vst [vmem:[#allocation7 + $0x8] sm:$0xff] %v861
    %880 = vst [vmem:[#allocation7 + $0x10] sm:$0xff] %v864
    %881 = vst [vmem:[#allocation7 + $0x18] sm:$0xff] %v866
    %882 = vst [vmem:[#allocation7 + $0x20] sm:$0xff] %v869
    %883 = vst [vmem:[#allocation7 + $0x28] sm:$0xff] %v871
    %884 = vst [vmem:[#allocation7 + $0x30] sm:$0xff] %v874
    %885 = vst [vmem:[#allocation7 + $0x38] sm:$0xff] %v876
    // Predicated region
    $region22: #{tpu_custom_call.1} parent=1 // pred_check
      _
    $region23: #{tpu_custom_call.1} parent=1 // pred_check_branch
      %887 = sbr.rel (0) target = $region25
    $region24: #{tpu_custom_call.1} parent=1 // pred_region
      %889 = vsyncadd [#allocation4], 0
      %s890 = sshll.u32 [#allocation7], 4
      %s891 = int_to_ptr.vmem [resolvable:$true] %s890
      %s892 = sshll.u32 %s3, 4
      %s893 = int_to_ptr.hbm [resolvable:$true] %s892
      %898 = dma.vmem_to_hbm [thread:$0]  %s891, 1024, %s893, [#allocation4], 128, 128, 8
    $region25: #{tpu_custom_call.1} parent=1 // pred_fallthru
      _
    // Predicated region
    $region26: #{tpu_custom_call.1} parent=1 // pred_check
      _
    $region27: #{tpu_custom_call.1} parent=1 // pred_check_branch
      %900 = sbr.rel (0) target = $region29
    $region28: #{tpu_custom_call.1} parent=1 // pred_region
      %902 = dma.done [#allocation4], 1024
    $region29: #{tpu_custom_call.1} parent=1 // pred_fallthru
      _
    %903 = vsyncpa [#allocation3], 1
    %904 = vsyncpa [#allocation6], 1
    %905 = vsyncpa [#allocation4], 1

</llo_original>
